<compile_context>
chip_gen: v6e
topology: v6e:2x2x1
jax: 0.10.0
libtpu: 0.0.40
codegen_flags: <defaults>
</compile_context>

<pallas_src>
import numpy as np

import jax
import jax.numpy as jnp
from jax.experimental import pallas as pl
from jax.experimental.pallas import tpu as pltpu


# ----------------------------------------------------------------------------
# Pallas kernel: fused MLM head + SPLADE pooling
# ----------------------------------------------------------------------------
def _splade_head_kernel(hid_ref, w_ref, bias_ref, mask_ref, logits_ref, sent_ref):
    # hid_ref:    (Bb, S, H)   bf16 hidden states for Bb batch rows (VMEM-resident
    #                          across the inner vocab grid axis)
    # w_ref:      (H, TV)      bf16 vocab-projection tile
    # bias_ref:   (1, TV)      f32 bias tile
    # mask_ref:   (Bb, S)      f32 attention mask (VMEM-resident across vocab axis)
    # logits_ref: (Bb, S, TV)  output token_embeddings tile (bf16 by default)
    # sent_ref:   (Bb, TV)     output sentence_embedding tile (f32)
    bb, s, h = hid_ref.shape
    tv = w_ref.shape[1]

    # One MXU matmul covering all Bb rows: (Bb*S, H) @ (H, TV), f32 accumulation.
    hid2d = hid_ref[...].reshape(bb * s, h)
    logits = jnp.dot(hid2d, w_ref[...], preferred_element_type=jnp.float32)
    logits = logits + bias_ref[...]                       # (1, TV) broadcast
    logits = logits.reshape(bb, s, tv)                    # f32
    logits_ref[...] = logits.astype(logits_ref.dtype)

    # SPLADE pooling in f32: max over seq of log(1 + relu(logits)) * mask.
    # log1p -> EUP slot, mul -> VPU, max -> XLU: all off the HBM/MXU critical path.
    act = jnp.log1p(jnp.maximum(logits, 0.0))
    act = act * mask_ref[...][:, :, None]
    sent_ref[...] = jnp.max(act, axis=1).astype(sent_ref.dtype)


def _pick_vocab_tile(V):
    for cand in (1024, 512, 256, 128):
        if V % cand == 0:
            return cand
    return V  # tiny-vocab fallback: one full-width tile


def _pick_batch_block(B):
    for cand in (8, 4, 2):
        if B % cand == 0:
            return cand
    return 1


def splade_mlm_head(hidden, w_vocab, b_vocab, attention_mask, *,
                    tv=None, bb=None, logits_dtype=jnp.bfloat16):
    """Fused MLM head + SPLADE pooling.

    hidden: [B, S, H] f32/bf16; w_vocab: [H, V]; b_vocab: [V]; mask: [B, S].
    Returns (token_embeddings [B, S, V] (logits_dtype), sentence_embedding [B, V] f32).
    """
    B, S, H = hidden.shape
    V = w_vocab.shape[1]

    tv = _pick_vocab_tile(V) if tv is None else tv
    bb = _pick_batch_block(B) if bb is None else bb
    assert V % tv == 0 and (tv == V or tv % 128 == 0), (V, tv)
    assert B % bb == 0, (B, bb)

    # bf16 operands on the matmul path; bias/mask stay f32 (added/multiplied in f32).
    hidden_bf = hidden.astype(jnp.bfloat16)
    w_bf = w_vocab.astype(jnp.bfloat16)
    bias2d = b_vocab.astype(jnp.float32).reshape(1, V)
    mask_f = attention_mask.astype(jnp.float32)

    grid = (B // bb, V // tv)  # vocab innermost: hidden/mask blocks stay resident

    logits_bytes = np.dtype(logits_dtype).itemsize
    # Double-buffered per-block VMEM budget (+ margin), capped for v7x (64 MiB).
    blk_bytes = (bb * S * H * 2 + H * tv * 2 + tv * 4 + bb * S * 4
                 + bb * S * tv * logits_bytes + bb * tv * 4)
    vmem_limit = int(min(max(2 * blk_bytes + (4 << 20), 16 << 20), 64 << 20))

    cost = pl.CostEstimate(
        flops=2 * B * S * H * V,
        transcendentals=B * S * V,  # log1p
        bytes_accessed=(B * S * H * 2            # hidden (bf16, streamed once)
                        + (B // bb) * H * V * 2  # W re-streamed once per batch block
                        + V * 4 + B * S * 4      # bias + mask
                        + B * S * V * logits_bytes  # logits writeback
                        + B * V * 4),            # sentence embedding
    )

    out_shape = (
        jax.ShapeDtypeStruct((B, S, V), logits_dtype),
        jax.ShapeDtypeStruct((B, V), jnp.float32),
    )
    return pl.pallas_call(
        _splade_head_kernel,
        out_shape=out_shape,
        grid_spec=pltpu.PrefetchScalarGridSpec(
            num_scalar_prefetch=0,
            grid=grid,
            in_specs=[
                pl.BlockSpec((bb, S, H), lambda b, v: (b, 0, 0)),   # hidden (resident over v)
                pl.BlockSpec((H, tv), lambda b, v: (0, v)),         # W_vocab tile
                pl.BlockSpec((1, tv), lambda b, v: (0, v)),         # bias tile
                pl.BlockSpec((bb, S), lambda b, v: (b, 0)),         # mask (resident over v)
            ],
            out_specs=[
                pl.BlockSpec((bb, S, tv), lambda b, v: (b, 0, v)),  # token_embeddings
                pl.BlockSpec((bb, tv), lambda b, v: (b, v)),        # sentence_embedding
            ],
        ),
        compiler_params=pltpu.CompilerParams(
            dimension_semantics=("parallel", "parallel"),
            vmem_limit_bytes=vmem_limit,
        ),
        cost_estimate=cost,
    )(hidden_bf, w_bf, bias2d, mask_f)


# ----------------------------------------------------------------------------
# Synthetic "auto_model" backbone (plain-JAX glue standing in for HF BERT MLM)
# ----------------------------------------------------------------------------
def synthetic_encoder(input_ids, params):
    emb = params["embedding"][input_ids]                       # [B, S, H] gather
    h = jnp.tanh(emb @ params["w_enc"] + params["b_enc"])      # tiny dense layer
    mu = jnp.mean(h, axis=-1, keepdims=True)
    var = jnp.var(h, axis=-1, keepdims=True)
    h = (h - mu) * jax.lax.rsqrt(var + 1e-12)                  # layernorm
    return h.astype(jnp.float32)


def mlm_transformer_forward(features, params, *, tv=None, bb=None):
    """Mirrors MLMTransformer.forward + Splade_Pooling.forward."""
    input_ids = features["input_ids"]
    attention_mask = features["attention_mask"]

    hidden = synthetic_encoder(input_ids, params)              # [B, S, H]
    token_embeddings, sentence_embedding = splade_mlm_head(
        hidden, params["w_vocab"], params["b_vocab"], attention_mask, tv=tv, bb=bb
    )
    out = dict(features)
    out.update(
        token_embeddings=token_embeddings,
        attention_mask=attention_mask,
        sentence_embedding=sentence_embedding,
    )
    return out


# ----------------------------------------------------------------------------
# Deterministic parameter init + demo
# ----------------------------------------------------------------------------
def init_params(key, vocab_size, hidden_dim):
    k1, k2, k3, k4 = jax.random.split(key, 4)
    return {
        "embedding": jax.random.normal(k1, (vocab_size, hidden_dim), jnp.float32) * 0.1,
        "w_enc": jax.random.normal(k2, (hidden_dim, hidden_dim), jnp.float32) * 0.1,
        "b_enc": jnp.zeros((hidden_dim,), jnp.float32),
        "w_vocab": jax.random.normal(k3, (hidden_dim, vocab_size), jnp.float32) * 0.1,
        "b_vocab": jax.random.normal(k4, (vocab_size,), jnp.float32) * 0.01,
    }


if __name__ == "__main__":
    # Small demo shapes; tiles exercise both grid axes (grid = (B//bb, V//tv) = (2, 2)).
    B, S, H, V = 16, 8, 32, 512
    BB, TV = 8, 256

    key = jax.random.PRNGKey(0)
    kp, kids = jax.random.split(key)
    params = init_params(kp, V, H)

    input_ids = jax.random.randint(kids, (B, S), 0, V, dtype=jnp.int32)
    lengths = jnp.array([S - (i % 3) for i in range(B)], dtype=jnp.int32)
    attention_mask = (jnp.arange(S)[None, :] < lengths[:, None]).astype(jnp.int32)

    features = {"input_ids": input_ids, "attention_mask": attention_mask}
    out = mlm_transformer_forward(features, params, tv=TV, bb=BB)
    jax.block_until_ready(out["sentence_embedding"])

    # Reference check against plain JAX with the same bf16 operand precision.
    hidden_ref = synthetic_encoder(input_ids, params)
    logits_ref = jnp.einsum(
        "bsh,hv->bsv",
        hidden_ref.astype(jnp.bfloat16),
        params["w_vocab"].astype(jnp.bfloat16),
        preferred_element_type=jnp.float32,
    ) + params["b_vocab"]
    mask_f = attention_mask.astype(jnp.float32)
    sent_ref = jnp.max(
        jnp.log1p(jnp.maximum(logits_ref, 0.0)) * mask_f[..., None], axis=1
    )

    assert out["token_embeddings"].shape == (B, S, V)
    assert out["sentence_embedding"].shape == (B, V)
    tok = out["token_embeddings"].astype(jnp.float32)
    assert jnp.allclose(tok, logits_ref, atol=2e-2, rtol=2e-2), (
        float(jnp.max(jnp.abs(tok - logits_ref))))
    assert jnp.allclose(out["sentence_embedding"], sent_ref, atol=2e-3, rtol=2e-3), (
        float(jnp.max(jnp.abs(out["sentence_embedding"] - sent_ref))))

    print("KERNEL_OK")
</pallas_src>

<mosaic_0001>
module attributes {stable_mosaic.version = 11 : i64} {
  func.func @_splade_head_kernel(%arg0: i32, %arg1: i32, %arg2: memref<8x8x32xbf16, #tpu.memory_space<vmem>>, %arg3: memref<32x256xbf16, #tpu.memory_space<vmem>>, %arg4: memref<1x256xf32, #tpu.memory_space<vmem>>, %arg5: memref<8x8xf32, #tpu.memory_space<vmem>>, %arg6: memref<8x8x256xbf16, #tpu.memory_space<vmem>>, %arg7: memref<8x256xf32, #tpu.memory_space<vmem>>) attributes {dimension_semantics = [#tpu.dimension_semantics<parallel>, #tpu.dimension_semantics<parallel>], iteration_bounds = array<i64: 2, 2>, scalar_prefetch = 0 : i64, scratch_operands = 0 : i64, tpu.core_type = #tpu.core_type<tc>, window_params = [{transform_indices = @transform_0, window_bounds = array<i64: 8, 8, 32>}, {transform_indices = @transform_1, window_bounds = array<i64: 32, 256>}, {transform_indices = @transform_2, window_bounds = array<i64: 1, 256>}, {transform_indices = @transform_3, window_bounds = array<i64: 8, 8>}, {transform_indices = @transform_4, window_bounds = array<i64: 8, 8, 256>}, {transform_indices = @transform_5, window_bounds = array<i64: 8, 256>}]} {
    %c0 = arith.constant 0 : index
    %c0_0 = arith.constant 0 : index
    %c0_1 = arith.constant 0 : index
    %0 = vector.load %arg2[%c0, %c0_0, %c0_1] : memref<8x8x32xbf16, #tpu.memory_space<vmem>>, vector<8x8x32xbf16>
    %1 = vector.shape_cast %0 : vector<8x8x32xbf16> to vector<64x32xbf16>
    %c0_2 = arith.constant 0 : index
    %c0_3 = arith.constant 0 : index
    %2 = vector.load %arg3[%c0_2, %c0_3] : memref<32x256xbf16, #tpu.memory_space<vmem>>, vector<32x256xbf16>
    %cst = arith.constant dense<0.000000e+00> : vector<64x256xf32>
    %3 = tpu.matmul %1, %2, %cst {dimension_numbers = #tpu.dot_dimension_numbers<[1], [0], [0], [1], [0, 0, 1, 1], [], []>} : vector<64x32xbf16>, vector<32x256xbf16>, vector<64x256xf32> -> vector<64x256xf32>
    %c0_4 = arith.constant 0 : index
    %c0_5 = arith.constant 0 : index
    %4 = vector.load %arg4[%c0_4, %c0_5] : memref<1x256xf32, #tpu.memory_space<vmem>>, vector<1x256xf32>
    %5 = vector.broadcast %4 : vector<1x256xf32> to vector<64x256xf32>
    %6 = arith.addf %3, %5 : vector<64x256xf32>
    %7 = vector.shape_cast %6 : vector<64x256xf32> to vector<8x8x256xf32>
    %8 = arith.truncf %7 : vector<8x8x256xf32> to vector<8x8x256xbf16>
    %c0_6 = arith.constant 0 : index
    %c0_7 = arith.constant 0 : index
    %c0_8 = arith.constant 0 : index
    %9 = vector.load %arg6[%c0_6, %c0_7, %c0_8] : memref<8x8x256xbf16, #tpu.memory_space<vmem>>, vector<8x8x256xbf16>
    tpu.vector_store %arg6[%c0_6, %c0_7, %c0_8], %8 {strides = array<i32>} : memref<8x8x256xbf16, #tpu.memory_space<vmem>>, vector<8x8x256xbf16>,
    %cst_9 = arith.constant 0.000000e+00 : f32
    %10 = vector.broadcast %cst_9 : f32 to vector<8x8x256xf32>
    %11 = arith.maximumf %7, %10 : vector<8x8x256xf32>
    %12 = math.log1p %11 : vector<8x8x256xf32>
    %c0_10 = arith.constant 0 : index
    %c0_11 = arith.constant 0 : index
    %13 = vector.load %arg5[%c0_10, %c0_11] : memref<8x8xf32, #tpu.memory_space<vmem>>, vector<8x8xf32>
    %14 = vector.shape_cast %13 : vector<8x8xf32> to vector<8x8x1xf32>
    %15 = vector.broadcast %14 : vector<8x8x1xf32> to vector<8x8x256xf32>
    %16 = arith.mulf %12, %15 : vector<8x8x256xf32>
    %cst_12 = arith.constant dense<0xFF800000> : vector<8x256xf32>
    %17 = vector.multi_reduction <maximumf>, %16, %cst_12 [1] : vector<8x8x256xf32> to vector<8x256xf32>
    %c0_13 = arith.constant 0 : index
    %c0_14 = arith.constant 0 : index
    %18 = vector.load %arg7[%c0_13, %c0_14] : memref<8x256xf32, #tpu.memory_space<vmem>>, vector<8x256xf32>
    tpu.vector_store %arg7[%c0_13, %c0_14], %17 {strides = array<i32>} : memref<8x256xf32, #tpu.memory_space<vmem>>, vector<8x256xf32>,
    return
  }
  func.func @transform_0(%arg0: i32, %arg1: i32) -> (i32, i32, i32) {
    %c0_i32 = arith.constant 0 : i32
    %c0_i32_0 = arith.constant 0 : i32
    %c0_i32_1 = arith.constant 0 : i32
    return %arg0, %c0_i32, %c0_i32_0 : i32, i32, i32
  }
  func.func @transform_1(%arg0: i32, %arg1: i32) -> (i32, i32) {
    %c0_i32 = arith.constant 0 : i32
    %c0_i32_0 = arith.constant 0 : i32
    return %c0_i32, %arg1 : i32, i32
  }
  func.func @transform_2(%arg0: i32, %arg1: i32) -> (i32, i32) {
    %c0_i32 = arith.constant 0 : i32
    %c0_i32_0 = arith.constant 0 : i32
    return %c0_i32, %arg1 : i32, i32
  }
  func.func @transform_3(%arg0: i32, %arg1: i32) -> (i32, i32) {
    %c0_i32 = arith.constant 0 : i32
    %c0_i32_0 = arith.constant 0 : i32
    return %arg0, %c0_i32 : i32, i32
  }
  func.func @transform_4(%arg0: i32, %arg1: i32) -> (i32, i32, i32) {
    %c0_i32 = arith.constant 0 : i32
    %c0_i32_0 = arith.constant 0 : i32
    return %arg0, %c0_i32, %arg1 : i32, i32, i32
  }
  func.func @transform_5(%arg0: i32, %arg1: i32) -> (i32, i32) {
    %c0_i32 = arith.constant 0 : i32
    return %arg0, %arg1 : i32, i32
  }
}

</mosaic_0001>

<llo_original>
// kernel: tpu_custom_call.1
$region0: #{tpu_custom_call.1}
  #allocation0 [shape = 'u32[]', space=smem, size = 0x4, offset = 0x4, fixed_abs, tag = 'smem constant byte address 0x4 - core index']
  #allocation1 [shape = 'u32[144,128]{1,0:T(1,128)}', space=vmem, size = 0x12000, scoped, tag = 'internal scratch']
  %s0 = inlined_call_operand.hbm [shape: bf16[16,8,32], index: 0, kind: input, shape index: {}]
  %s1 = inlined_call_operand.hbm [shape: bf16[32,512], index: 1, kind: input, shape index: {}]
  %s2 = inlined_call_operand.vmem [shape: f32[1,512], index: 2, kind: input, shape index: {}]
  %s3 = inlined_call_operand.vmem [shape: f32[16,8], index: 3, kind: input, shape index: {}]
  %s4 = inlined_call_operand.hbm [shape: bf16[16,8,512], index: 4, kind: output, shape index: {0}]
  %s5 = inlined_call_operand.hbm [shape: f32[16,512], index: 5, kind: output, shape index: {1}]
  %6 = xla_tuple %s4, %s5
  %s7 = sld [smem:[#allocation0]]
  $region65: #{tpu_custom_call.1} parent=0
    _
  %s9 = ssub.s32 1, %s7
  %s10 = scalar_select 0, %s9, %s7
  $region1: #{tpu_custom_call.1} parent=0
    #allocation2 [shape = 'u8[32768]{0}', space=vmem, size = 0x8000, scoped, tag = 'input window, operand 0']
    #allocation3 [shape = 's32[2]{0}', space=sflag, size = 0x8, scoped, tag = 'scoped memory for tpu_custom_call.1']
    #allocation4 [shape = 's32[2]{0}', space=sflag, size = 0x8, scoped, tag = 'scoped memory for tpu_custom_call.1']
    #allocation5 [shape = 'u8[32768]{0}', space=vmem, size = 0x8000, scoped, tag = 'input window, operand 1']
    #allocation6 [shape = 's32[2]{0}', space=sflag, size = 0x8, scoped, tag = 'scoped memory for tpu_custom_call.1']
    #allocation7 [shape = 'u8[65536]{0}', space=vmem, size = 0x10000, scoped, tag = 'output window, operand 0']
    #allocation8 [shape = 'u8[16384]{0}', space=vmem, size = 0x4000, scoped, tag = 'output window, operand 1']
    #allocation9 [shape = 's32[2]{0}', space=sflag, size = 0x8, scoped, tag = 'scoped memory for tpu_custom_call.1']
    %11 = vsyncpa [#allocation3], 0
    %s12 = scalar_lea.sflag [#allocation3], 1
    %13 = vsyncpa %s12, 0
    %14 = vsyncpa [#allocation6], 0
    %s15 = scalar_lea.sflag [#allocation6], 1
    %16 = vsyncpa %s15, 0
    %17 = vsyncpa [#allocation4], 0
    %s18 = scalar_lea.sflag [#allocation4], 1
    %19 = vsyncpa %s18, 0
    %20 = vsyncpa [#allocation9], 0
    %s21 = scalar_lea.sflag [#allocation9], 1
    %22 = vsyncpa %s21, 0
    loop: start=0, step=1, limit=6
    $region2: #{tpu_custom_call.1} parent=1 // loop_pre_header
      _
    $region3: #{tpu_custom_call.1} parent=1 // loop_header
      %s24 = sphi 0, %s28
      %p25 = scmp.ge.s32.totalorder %s24, 6
      %s31 = sphi 0, %s43
      %s32 = sphi 0, %s39
      %s33 = sphi 0, %s31
      %s34 = sphi 0, %s32
      %s35 = sphi 0, %s33
      %s36 = sphi 0, %s34
      %s46 = sphi 0, %s48
      %s49 = sphi 0, %s46
      %s50 = sphi 0, %s49
      %s66 = sphi 0, %s50
      %s72 = sphi 0, %s74
      %s75 = sphi 0, %s72
      %s76 = sphi 0, %s75
      %s92 = sphi 0, %s76
      %s98 = sphi 0, %s100
      %s101 = sphi 0, %s98
      %s102 = sphi 0, %s101
      %s118 = sphi 0, %s102
      %s124 = sphi 0, %s126
      %s127 = sphi 0, %s124
      %s128 = sphi 0, %s127
      %s144 = sphi 0, %s128
      %s152 = sphi 0, %s154
      %s155 = sphi 0, %s152
      %s156 = sphi 0, %s155
      %s172 = sphi 0, %s156
      %s180 = sphi 0, %s182
      %s183 = sphi 0, %s180
      %s184 = sphi 0, %s183
      %s200 = sphi 0, %s184
    $region4: #{tpu_custom_call.1} parent=1 // loop_header_branch
      %27 = sbr.rel (%p25) target = $region8
    $region5: #{tpu_custom_call.1} parent=1 // loop_body
      %s29 = ssub.s32 %s24, 1
      %s30 = ssub.s32 %s24, 2
      %s37 = sadd.s32 1, %s32
      %p38 = scmp.ge.s32.totalorder %s37, 2
      %s39 = scalar_select %p38, 0, %s37
      %s40 = sadd.s32 1, %s31
      %s41 = scalar_select %p38, %s40, %s31
      %p42 = scmp.ge.s32.totalorder %s41, 2
      %s43 = scalar_select %p42, 0, %s41
      %s44 = ssub.s32 %s31, %s43
      %p45 = scmp.eq.s32.totalorder %s44, 0
      %s47 = sadd.s32 %s46, 1
      %s48 = scalar_select %p45, %s46, %s47
      %p51 = pneg %p45
      %p52 = scmp.eq.s32.totalorder %s24, 3
      %p53 = por %p51, %p52
      %p54 = scmp.ne.s32.totalorder %s46, %s49
      %p55 = scmp.eq.s32.totalorder %s24, 0
      %p56 = por %p54, %p55
      %p57 = scmp.ne.s32.totalorder %s46, %s49
      %p58 = scmp.eq.s32.totalorder %s29, 3
      %p59 = por %p57, %p58
      %p60 = scmp.ne.s32.totalorder %s49, %s50
      %p61 = scmp.eq.s32.totalorder %s29, 0
      %p62 = por %p60, %p61
      %p63 = scmp.ne.s32.totalorder %s49, %s50
      %p64 = scmp.eq.s32.totalorder %s30, 3
      %p65 = por %p63, %p64
      %p67 = scmp.ne.s32.totalorder %s50, %s66
      %p68 = scmp.eq.s32.totalorder %s30, 0
      %p69 = por %p67, %p68
      %s70 = ssub.s32 %s32, %s39
      %p71 = scmp.eq.s32.totalorder %s70, 0
      %s73 = sadd.s32 %s72, 1
      %s74 = scalar_select %p71, %s72, %s73
      %p77 = pneg %p71
      %p78 = scmp.eq.s32.totalorder %s24, 3
      %p79 = por %p77, %p78
      %p80 = scmp.ne.s32.totalorder %s72, %s75
      %p81 = scmp.eq.s32.totalorder %s24, 0
      %p82 = por %p80, %p81
      %p83 = scmp.ne.s32.totalorder %s72, %s75
      %p84 = scmp.eq.s32.totalorder %s29, 3
      %p85 = por %p83, %p84
      %p86 = scmp.ne.s32.totalorder %s75, %s76
      %p87 = scmp.eq.s32.totalorder %s29, 0
      %p88 = por %p86, %p87
      %p89 = scmp.ne.s32.totalorder %s75, %s76
      %p90 = scmp.eq.s32.totalorder %s30, 3
      %p91 = por %p89, %p90
      %p93 = scmp.ne.s32.totalorder %s76, %s92
      %p94 = scmp.eq.s32.totalorder %s30, 0
      %p95 = por %p93, %p94
      %s96 = ssub.s32 %s32, %s39
      %p97 = scmp.eq.s32.totalorder %s96, 0
      %s99 = sadd.s32 %s98, 1
      %s100 = scalar_select %p97, %s98, %s99
      %p103 = pneg %p97
      %p104 = scmp.eq.s32.totalorder %s24, 3
      %p105 = por %p103, %p104
      %p106 = scmp.ne.s32.totalorder %s98, %s101
      %p107 = scmp.eq.s32.totalorder %s24, 0
      %p108 = por %p106, %p107
      %p109 = scmp.ne.s32.totalorder %s98, %s101
      %p110 = scmp.eq.s32.totalorder %s29, 3
      %p111 = por %p109, %p110
      %p112 = scmp.ne.s32.totalorder %s101, %s102
      %p113 = scmp.eq.s32.totalorder %s29, 0
      %p114 = por %p112, %p113
      %p115 = scmp.ne.s32.totalorder %s101, %s102
      %p116 = scmp.eq.s32.totalorder %s30, 3
      %p117 = por %p115, %p116
      %p119 = scmp.ne.s32.totalorder %s102, %s118
      %p120 = scmp.eq.s32.totalorder %s30, 0
      %p121 = por %p119, %p120
      %s122 = ssub.s32 %s31, %s43
      %p123 = scmp.eq.s32.totalorder %s122, 0
      %s125 = sadd.s32 %s124, 1
      %s126 = scalar_select %p123, %s124, %s125
      %p129 = pneg %p123
      %p130 = scmp.eq.s32.totalorder %s24, 3
      %p131 = por %p129, %p130
      %p132 = scmp.ne.s32.totalorder %s124, %s127
      %p133 = scmp.eq.s32.totalorder %s24, 0
      %p134 = por %p132, %p133
      %p135 = scmp.ne.s32.totalorder %s124, %s127
      %p136 = scmp.eq.s32.totalorder %s29, 3
      %p137 = por %p135, %p136
      %p138 = scmp.ne.s32.totalorder %s127, %s128
      %p139 = scmp.eq.s32.totalorder %s29, 0
      %p140 = por %p138, %p139
      %p141 = scmp.ne.s32.totalorder %s127, %s128
      %p142 = scmp.eq.s32.totalorder %s30, 3
      %p143 = por %p141, %p142
      %p145 = scmp.ne.s32.totalorder %s128, %s144
      %p146 = scmp.eq.s32.totalorder %s30, 0
      %p147 = por %p145, %p146
      %s148 = ssub.s32 %s31, %s43
      %s149 = ssub.s32 %s32, %s39
      %s150 = sor.u32 %s148, %s149
      %p151 = scmp.eq.s32.totalorder %s150, 0
      %s153 = sadd.s32 %s152, 1
      %s154 = scalar_select %p151, %s152, %s153
      %p157 = pneg %p151
      %p158 = scmp.eq.s32.totalorder %s24, 3
      %p159 = por %p157, %p158
      %p160 = scmp.ne.s32.totalorder %s152, %s155
      %p161 = scmp.eq.s32.totalorder %s24, 0
      %p162 = por %p160, %p161
      %p163 = scmp.ne.s32.totalorder %s152, %s155
      %p164 = scmp.eq.s32.totalorder %s29, 3
      %p165 = por %p163, %p164
      %p166 = scmp.ne.s32.totalorder %s155, %s156
      %p167 = scmp.eq.s32.totalorder %s29, 0
      %p168 = por %p166, %p167
      %p169 = scmp.ne.s32.totalorder %s155, %s156
      %p170 = scmp.eq.s32.totalorder %s30, 3
      %p171 = por %p169, %p170
      %p173 = scmp.ne.s32.totalorder %s156, %s172
      %p174 = scmp.eq.s32.totalorder %s30, 0
      %p175 = por %p173, %p174
      %s176 = ssub.s32 %s31, %s43
      %s177 = ssub.s32 %s32, %s39
      %s178 = sor.u32 %s176, %s177
      %p179 = scmp.eq.s32.totalorder %s178, 0
      %s181 = sadd.s32 %s180, 1
      %s182 = scalar_select %p179, %s180, %s181
      %p185 = pneg %p179
      %p186 = scmp.eq.s32.totalorder %s24, 3
      %p187 = por %p185, %p186
      %p188 = scmp.ne.s32.totalorder %s180, %s183
      %p189 = scmp.eq.s32.totalorder %s24, 0
      %p190 = por %p188, %p189
      %p191 = scmp.ne.s32.totalorder %s180, %s183
      %p192 = scmp.eq.s32.totalorder %s29, 3
      %p193 = por %p191, %p192
      %p194 = scmp.ne.s32.totalorder %s183, %s184
      %p195 = scmp.eq.s32.totalorder %s29, 0
      %p196 = por %p194, %p195
      %p197 = scmp.ne.s32.totalorder %s183, %s184
      %p198 = scmp.eq.s32.totalorder %s30, 3
      %p199 = por %p197, %p198
      %p201 = scmp.ne.s32.totalorder %s184, %s200
      %p202 = scmp.eq.s32.totalorder %s30, 0
      %p203 = por %p201, %p202
      %p204 = scmp.le.s32.totalorder 1, %s24
      %p205 = scmp.lt.s32.totalorder %s24, 5
      %p206 = pnand %p204, %p205
      %p207 = pneg %p206
      // Predicated region
      $region9: #{tpu_custom_call.1} parent=5 // pred_check
        _
      $region10: #{tpu_custom_call.1} parent=5 // pred_check_branch
        %209 = sbr.rel (%p206) target = $region12
      $region11: #{tpu_custom_call.1} parent=5 // pred_region
        %s210 = ssub.s32 %s24, 1
      $region12: #{tpu_custom_call.1} parent=5 // pred_fallthru
        _
      %p211 = scmp.lt.s32.totalorder %s24, 4
      // Predicated region
      $region13: #{tpu_custom_call.1} parent=5 // pred_check
        %p212 = pneg %p211
      $region14: #{tpu_custom_call.1} parent=5 // pred_check_branch
        %214 = sbr.rel (%p212) target = $region16
      $region15: #{tpu_custom_call.1} parent=5 // pred_region
        // Predicated region
        $region17: #{tpu_custom_call.1} parent=15 // pred_check
          %p215 = pneg %p56
        $region18: #{tpu_custom_call.1} parent=15 // pred_check_branch
          %217 = sbr.rel (%p215) target = $region20
        $region19: #{tpu_custom_call.1} parent=15 // pred_region
          %s218 = sand.u32 %s46, 1
          %s219 = scalar_lea.sflag [#allocation3], %s218
          %s220 = sand.u32 %s46, 1
          %s221 = smul.addr %s220, 32
          %s222 = scalar_lea.vmem [#allocation2], %s221
          %s223 = smul.u32 8, %s31
          %s225 = ssub.s32 512, 512
          %226 = vsyncadd %s219, %s225
          %s227 = smul.addr %s223, 64
          %s228 = scalar_lea.hbm %s0, %s227
          %s229 = sshll.u32 %s222, 4
          %s230 = int_to_ptr.vmem [resolvable:$true] %s229
          %235 = dma.hbm_to_vmem [thread:$0]  %s228, 512, %s230, %s219, 64, 64, 4
        $region20: #{tpu_custom_call.1} parent=15 // pred_fallthru
          _
        // Predicated region
        $region21: #{tpu_custom_call.1} parent=15 // pred_check
          %p236 = pneg %p82
        $region22: #{tpu_custom_call.1} parent=15 // pred_check_branch
          %238 = sbr.rel (%p236) target = $region24
        $region23: #{tpu_custom_call.1} parent=15 // pred_region
          %s239 = sand.u32 %s72, 1
          %s240 = scalar_lea.sflag [#allocation6], %s239
          %s241 = sand.u32 %s72, 1
          %s242 = smul.addr %s241, 32
          %s243 = scalar_lea.vmem [#allocation5], %s242
          %s244 = smul.u32 2, %s32
          %s246 = ssub.s32 512, 512
          %247 = vsyncadd %s240, %s246
          %s248 = smul.addr %s244, 64
          %s249 = scalar_lea.hbm %s1, %s248
          %s250 = sshll.u32 %s243, 4
          %s251 = int_to_ptr.vmem [resolvable:$true] %s250
          %256 = dma.hbm_to_vmem [thread:$0]  %s249, 512, %s251, %s240, 256, 128, 8
        $region24: #{tpu_custom_call.1} parent=15 // pred_fallthru
          _
        // Predicated region
        $region25: #{tpu_custom_call.1} parent=15 // pred_check
          %p257 = pneg %p108
        $region26: #{tpu_custom_call.1} parent=15 // pred_check_branch
          %259 = sbr.rel (%p257) target = $region28
        $region27: #{tpu_custom_call.1} parent=15 // pred_region
          %s260 = smul.u32 2, %s32
          %p261 = scmp.lt.s32.totalorder %s260, 3
          %s262 = scalar_select %p261, %s260, 3
          %s263 = scalar_lea.vmem %s2, %s262
          %s264 = smul.u32 2, %s32
        $region28: #{tpu_custom_call.1} parent=15 // pred_fallthru
          _
        // Predicated region
        $region29: #{tpu_custom_call.1} parent=15 // pred_check
          %p265 = pneg %p134
        $region30: #{tpu_custom_call.1} parent=15 // pred_check_branch
          %267 = sbr.rel (%p265) target = $region32
        $region31: #{tpu_custom_call.1} parent=15 // pred_region
          %p268 = scmp.lt.s32.totalorder %s31, 1
          %s269 = scalar_select %p268, %s31, 1
          %s270 = smul.addr %s269, 8
          %s271 = scalar_lea.vmem %s3, %s270
        $region32: #{tpu_custom_call.1} parent=15 // pred_fallthru
          _
      $region16: #{tpu_custom_call.1} parent=5 // pred_fallthru
        _
      %p272 = scmp.le.s32.totalorder 1, %s24
      %p273 = scmp.lt.s32.totalorder %s24, 5
      %p274 = pnand %p272, %p273
      %p275 = pneg %p274
      // Predicated region
      $region33: #{tpu_custom_call.1} parent=5 // pred_check
        _
      $region34: #{tpu_custom_call.1} parent=5 // pred_check_branch
        %277 = sbr.rel (%p274) target = $region36
      $region35: #{tpu_custom_call.1} parent=5 // pred_region
        %s278 = ssub.s32 %s24, 1
        %s279 = sand.u32 %s49, 1
        %s280 = scalar_lea.sflag [#allocation3], %s279
        %s281 = sand.u32 %s49, 1
        %s282 = smul.addr %s281, 32
        %s283 = scalar_lea.vmem [#allocation2], %s282
        // Predicated region
        $region37: #{tpu_custom_call.1} parent=35 // pred_check
          %p284 = pneg %p62
        $region38: #{tpu_custom_call.1} parent=35 // pred_check_branch
          %286 = sbr.rel (%p284) target = $region40
        $region39: #{tpu_custom_call.1} parent=35 // pred_region
          %287 = dma.done %s280, 512
        $region40: #{tpu_custom_call.1} parent=35 // pred_fallthru
          _
        %s288 = sand.u32 %s75, 1
        %s289 = scalar_lea.sflag [#allocation6], %s288
        %s290 = sand.u32 %s75, 1
        %s291 = smul.addr %s290, 32
        %s292 = scalar_lea.vmem [#allocation5], %s291
        // Predicated region
        $region41: #{tpu_custom_call.1} parent=35 // pred_check
          %p293 = pneg %p88
        $region42: #{tpu_custom_call.1} parent=35 // pred_check_branch
          %295 = sbr.rel (%p293) target = $region44
        $region43: #{tpu_custom_call.1} parent=35 // pred_region
          %296 = dma.done %s289, 512
        $region44: #{tpu_custom_call.1} parent=35 // pred_fallthru
          _
        %s297 = sand.u32 %s49, 1
        %s298 = scalar_lea.sflag [#allocation3], %s297
        %s299 = sand.u32 %s49, 1
        %s300 = smul.addr %s299, 32
        %s301 = scalar_lea.vmem [#allocation2], %s300
        %p302 = pneg %p62
        %p303 = pneg %p59
        %s304 = sand.u32 %s75, 1
        %s305 = scalar_lea.sflag [#allocation6], %s304
        %s306 = sand.u32 %s75, 1
        %s307 = smul.addr %s306, 32
        %s308 = scalar_lea.vmem [#allocation5], %s307
        %p309 = pneg %p88
        %p310 = pneg %p85
        %s311 = smul.u32 2, %s34
        %p312 = scmp.lt.s32.totalorder %s311, 3
        %s313 = scalar_select %p312, %s311, 3
        %s314 = scalar_lea.vmem %s2, %s313
        %p315 = pneg %p114
        %p316 = pneg %p111
        %p317 = scmp.lt.s32.totalorder %s33, 1
        %s318 = scalar_select %p317, %s33, 1
        %s319 = smul.addr %s318, 8
        %s320 = scalar_lea.vmem %s3, %s319
        %p321 = pneg %p140
        %p322 = pneg %p137
        %p323 = pneg %p168
        %p324 = pneg %p165
        %s325 = sand.u32 %s155, 1
        %s326 = scalar_lea.sflag [#allocation4], %s325
        %s327 = sand.u32 %s155, 1
        %s328 = smul.addr %s327, 64
        %s329 = scalar_lea.vmem [#allocation7], %s328
        %p330 = pneg %p196
        %p331 = pneg %p193
        %s332 = sand.u32 %s183, 1
        %s333 = scalar_lea.sflag [#allocation9], %s332
        %s334 = sand.u32 %s183, 1
        %s335 = smul.addr %s334, 16
        %s336 = scalar_lea.vmem [#allocation8], %s335
        %s337 = smul.u32 8, %s33
        %s338 = smul.u32 2, %s34
        %s339 = smul.u32 2, %s34
        %p340 = scmp.lt.s32.totalorder %s339, 3
        %s341 = scalar_select %p340, %s339, 3
        %s342 = scalar_lea.vmem %s2, %s341
        %s343 = smul.u32 2, %s34
        %p344 = scmp.lt.s32.totalorder %s33, 1
        %s345 = scalar_select %p344, %s33, 1
        %s346 = smul.addr %s345, 8
        %s347 = scalar_lea.vmem %s3, %s346
        %s348 = smul.u32 8, %s33
        %s349 = smul.u32 2, %s34
        %s350 = smul.u32 2, %s34
        %v352 = vld [vmem:[%s283] sm:$0xf]
        %v353 = vld [vmem:[%s283 + $0x4] sm:$0xf]
        %v354 = vld [vmem:[%s283 + $0x8] sm:$0xf]
        %v355 = vld [vmem:[%s283 + $0xc] sm:$0xf]
        %v356 = vld [vmem:[%s283 + $0x10] sm:$0xf]
        %v357 = vld [vmem:[%s283 + $0x14] sm:$0xf]
        %v358 = vld [vmem:[%s283 + $0x18] sm:$0xf]
        %v359 = vld [vmem:[%s283 + $0x1c] sm:$0xf]
        %v360 = vld [vmem:[%s292] sm:$0xff]
        %v361 = vld [vmem:[%s292 + $0x8] sm:$0xff]
        %v362 = vld [vmem:[%s292 + $0x10] sm:$0xff]
        %v363 = vld [vmem:[%s292 + $0x18] sm:$0xff]
        %v364 = vld [vmem:[%s342] sm:$0x3]
        %v366 = vlaneseq
        %v367 = vshrl.u32 %v366, 7
        %v368 = vsub.s32 0, %v367
        %v369 = vrot.slane %v364, %v368
        %v370 = vlaneseq
        %v371 = vshrl.u32 %v370, 7
        %v372 = vsub.s32 1, %v371
        %v373 = vrot.slane %v364, %v372
        %v384 = vunpack.c.l.b16 %v352
        %v385 = vunpack.c.l.b16 %v353
        %v386 = vunpack.c.l.b16 %v354
        %v387 = vunpack.c.l.b16 %v355
        %v388 = vunpack.c.l.b16 %v356
        %v389 = vunpack.c.l.b16 %v357
        %v390 = vunpack.c.l.b16 %v358
        %v391 = vunpack.c.l.b16 %v359
        %v392 = vpack.c.b16 %v385, %v384
        %v393 = vpack.c.b16 %v387, %v386
        %v394 = vpack.c.b16 %v389, %v388
        %v395 = vpack.c.b16 %v391, %v390
        %v400 = vunpack.c.l.b16 %v360
        %v401 = vunpack.c.h.b16 %v360
        %v402 = vunpack.c.l.b16 %v361
        %v403 = vunpack.c.h.b16 %v361
        %v404 = vunpack.c.l.b16 %v362
        %v405 = vunpack.c.h.b16 %v362
        %v406 = vunpack.c.l.b16 %v363
        %v407 = vunpack.c.h.b16 %v363
        %v408 = vpack.c.b16 %v402, %v400
        %v409 = vpack.c.b16 %v403, %v401
        %v410 = vpack.c.b16 %v406, %v404
        %v411 = vpack.c.b16 %v407, %v405
        %vm416 = vcmask 261120
        %v418 = vsel %vm416, %v392, 0
        %v421 = vsel %vm416, %v393, 0
        %v424 = vsel %vm416, %v394, 0
        %v427 = vsel %vm416, %v395, 0
        %429 = vmatprep.subr.bf16.mxu0 0
        %430 = vmatpush1.bf16.msra.mxu0 0
        %431 = vmatprep.subr.bf16.mxu0 0
        %432 = vmatpush1.bf16.msra.mxu0 0
        %433 = vmatprep.subr.bf16.mxu0 0
        %434 = vmatpush1.bf16.msra.mxu0 0
        %435 = vmatprep.subr.bf16.mxu0 0
        %436 = vmatpush1.bf16.msra.mxu0 0
        %437 = vmatprep.subr.bf16.mxu0 0
        %438 = vmatpush1.bf16.msra.mxu0 0
        %439 = vmatprep.subr.bf16.mxu0 0
        %440 = vmatpush1.bf16.msra.mxu0 0
        %441 = vmatprep.subr.bf16.mxu0 %v411
        %442 = vmatpush1.bf16.msra.mxu0 %v410
        %443 = vmatprep.subr.bf16.mxu0 %v409
        %444 = vmatpush1.bf16.msra.mxu0 %v408
        %445 = vmatprep.subr.bf16.mxu0 0
        %446 = vmatpush2.bf16.msra.mxu0 0
        %447 = vmatprep.subr.bf16.mxu0 0
        %448 = vmatpush2.bf16.msra.mxu0 0
        %449 = vmatprep.subr.bf16.mxu0 0
        %450 = vmatpush2.bf16.msra.mxu0 0
        %451 = vmatprep.subr.bf16.mxu0 0
        %452 = vmatpush2.bf16.msra.mxu0 0
        %453 = vmatprep.subr.bf16.mxu0 0
        %454 = vmatpush2.bf16.msra.mxu0 0
        %455 = vmatprep.subr.bf16.mxu0 0
        %456 = vmatpush2.bf16.msra.mxu0 0
        %457 = vmatprep.subr.bf16.mxu0 0
        %458 = vmatpush2.bf16.msra.mxu0 0
        %459 = vmatprep.subr.bf16.mxu0 0
        %460 = vmatpush2.bf16.msra.mxu0 0
        %461 = vmatprep.mubr.bf16.mxu0 0
        %462 = vmatmul.mubr.bf16.gmra.mxu0 %v418
        %v463 = vpop.f32.mrf.mxu0
        %v464 = vadd.f32 %v369, %v463
        %v465 = vpop.f32.mrf.mxu0
        %v466 = vadd.f32 %v373, %v465
        %v467 = vpop.f32.mrf.mxu0
        %v468 = vadd.f32 %v369, %v467
        %v469 = vpop.f32.mrf.mxu0
        %v470 = vadd.f32 %v373, %v469
        %471 = vmatprep.mubr.bf16.mxu0 0
        %472 = vmatmul.mubr.bf16.gmra.mxu0 %v421
        %v473 = vpop.f32.mrf.mxu0
        %v474 = vadd.f32 %v369, %v473
        %v475 = vpop.f32.mrf.mxu0
        %v476 = vadd.f32 %v373, %v475
        %v477 = vpop.f32.mrf.mxu0
        %v478 = vadd.f32 %v369, %v477
        %v479 = vpop.f32.mrf.mxu0
        %v480 = vadd.f32 %v373, %v479
        %481 = vmatprep.mubr.bf16.mxu0 0
        %482 = vmatmul.mubr.bf16.gmra.mxu0 %v424
        %v483 = vpop.f32.mrf.mxu0
        %v484 = vadd.f32 %v369, %v483
        %v485 = vpop.f32.mrf.mxu0
        %v486 = vadd.f32 %v373, %v485
        %v487 = vpop.f32.mrf.mxu0
        %v488 = vadd.f32 %v369, %v487
        %v489 = vpop.f32.mrf.mxu0
        %v490 = vadd.f32 %v373, %v489
        %491 = vmatprep.mubr.bf16.mxu0 0
        %492 = vmatmul.mubr.bf16.gmra.mxu0 %v427
        %v493 = vpop.f32.mrf.mxu0
        %v494 = vadd.f32 %v369, %v493
        %v495 = vpop.f32.mrf.mxu0
        %v496 = vadd.f32 %v373, %v495
        %v497 = vpop.f32.mrf.mxu0
        %v498 = vadd.f32 %v369, %v497
        %v499 = vpop.f32.mrf.mxu0
        %v500 = vadd.f32 %v373, %v499
        %501 = vdwg.mxu0
        %v502 = vpack.c.bf16 %v464, %v464
        %v503 = vpack.c.bf16 %v466, %v466
        %v504 = vpack.c.bf16 %v468, %v468
        %v505 = vpack.c.bf16 %v470, %v470
        %v506 = vpack.c.bf16 %v474, %v474
        %v507 = vpack.c.bf16 %v476, %v476
        %v508 = vpack.c.bf16 %v478, %v478
        %v509 = vpack.c.bf16 %v480, %v480
        %v510 = vpack.c.bf16 %v484, %v484
        %v511 = vpack.c.bf16 %v486, %v486
        %v512 = vpack.c.bf16 %v488, %v488
        %v513 = vpack.c.bf16 %v490, %v490
        %v514 = vpack.c.bf16 %v494, %v494
        %v515 = vpack.c.bf16 %v496, %v496
        %v516 = vpack.c.bf16 %v498, %v498
        %v517 = vpack.c.bf16 %v500, %v500
        %v534 = vunpack.c.l.b16 %v502
        %v535 = vunpack.c.l.b16 %v503
        %v536 = vunpack.c.l.b16 %v504
        %v537 = vunpack.c.l.b16 %v505
        %v538 = vunpack.c.l.b16 %v506
        %v539 = vunpack.c.l.b16 %v507
        %v540 = vunpack.c.l.b16 %v508
        %v541 = vunpack.c.l.b16 %v509
        %v542 = vunpack.c.l.b16 %v510
        %v543 = vunpack.c.l.b16 %v511
        %v544 = vunpack.c.l.b16 %v512
        %v545 = vunpack.c.l.b16 %v513
        %v546 = vunpack.c.l.b16 %v514
        %v547 = vunpack.c.l.b16 %v515
        %v548 = vunpack.c.l.b16 %v516
        %v549 = vunpack.c.l.b16 %v517
        %v550 = vpack.c.b16 %v535, %v534
        %v551 = vpack.c.b16 %v537, %v536
        %v552 = vpack.c.b16 %v539, %v538
        %v553 = vpack.c.b16 %v541, %v540
        %v554 = vpack.c.b16 %v543, %v542
        %v555 = vpack.c.b16 %v545, %v544
        %v556 = vpack.c.b16 %v547, %v546
        %v557 = vpack.c.b16 %v549, %v548
        %566 = vst [vmem:[%s329] sm:$0xff] %v550
        %567 = vst [vmem:[%s329 + $0x8] sm:$0xff] %v551
        %568 = vst [vmem:[%s329 + $0x10] sm:$0xff] %v552
        %569 = vst [vmem:[%s329 + $0x18] sm:$0xff] %v553
        %570 = vst [vmem:[%s329 + $0x20] sm:$0xff] %v554
        %571 = vst [vmem:[%s329 + $0x28] sm:$0xff] %v555
        %572 = vst [vmem:[%s329 + $0x30] sm:$0xff] %v556
        %573 = vst [vmem:[%s329 + $0x38] sm:$0xff] %v557
        %v574 = vmax.f32 %v464, 0.0
        %v575 = vmax.f32 %v466, 0.0
        %v576 = vmax.f32 %v468, 0.0
        %v577 = vmax.f32 %v470, 0.0
        %v578 = vmax.f32 %v474, 0.0
        %v579 = vmax.f32 %v476, 0.0
        %v580 = vmax.f32 %v478, 0.0
        %v581 = vmax.f32 %v480, 0.0
        %v582 = vmax.f32 %v484, 0.0
        %v583 = vmax.f32 %v486, 0.0
        %v584 = vmax.f32 %v488, 0.0
        %v585 = vmax.f32 %v490, 0.0
        %v586 = vmax.f32 %v494, 0.0
        %v587 = vmax.f32 %v496, 0.0
        %v588 = vmax.f32 %v498, 0.0
        %v589 = vmax.f32 %v500, 0.0
        %v590 = vadd.f32 %v574, 1.0
        %v591 = vlog2.pop %v590
        %v592 = vmul.f32 %v591, 0.6931472
        %v593 = vmul.f32 -0.5, %v574
        %v594 = vadd.f32 %v593, 1.0
        %v595 = vmul.f32 %v594, %v574
        %v596 = vand.u32 2147483647, %v574
        %vm597 = vcmp.lt.f32.partialorder %v596, 0.0004427343
        %v598 = vsel %vm597, %v595, %v592
        %v599 = vadd.f32 %v575, 1.0
        %v600 = vlog2.pop %v599
        %v601 = vmul.f32 %v600, 0.6931472
        %v602 = vmul.f32 -0.5, %v575
        %v603 = vadd.f32 %v602, 1.0
        %v604 = vmul.f32 %v603, %v575
        %v605 = vand.u32 2147483647, %v575
        %vm606 = vcmp.lt.f32.partialorder %v605, 0.0004427343
        %v607 = vsel %vm606, %v604, %v601
        %v608 = vadd.f32 %v576, 1.0
        %v609 = vlog2.pop %v608
        %v610 = vmul.f32 %v609, 0.6931472
        %v611 = vmul.f32 -0.5, %v576
        %v612 = vadd.f32 %v611, 1.0
        %v613 = vmul.f32 %v612, %v576
        %v614 = vand.u32 2147483647, %v576
        %vm615 = vcmp.lt.f32.partialorder %v614, 0.0004427343
        %v616 = vsel %vm615, %v613, %v610
        %v617 = vadd.f32 %v577, 1.0
        %v618 = vlog2.pop %v617
        %v619 = vmul.f32 %v618, 0.6931472
        %v620 = vmul.f32 -0.5, %v577
        %v621 = vadd.f32 %v620, 1.0
        %v622 = vmul.f32 %v621, %v577
        %v623 = vand.u32 2147483647, %v577
        %vm624 = vcmp.lt.f32.partialorder %v623, 0.0004427343
        %v625 = vsel %vm624, %v622, %v619
        %v626 = vadd.f32 %v578, 1.0
        %v627 = vlog2.pop %v626
        %v628 = vmul.f32 %v627, 0.6931472
        %v629 = vmul.f32 -0.5, %v578
        %v630 = vadd.f32 %v629, 1.0
        %v631 = vmul.f32 %v630, %v578
        %v632 = vand.u32 2147483647, %v578
        %vm633 = vcmp.lt.f32.partialorder %v632, 0.0004427343
        %v634 = vsel %vm633, %v631, %v628
        %v635 = vadd.f32 %v579, 1.0
        %v636 = vlog2.pop %v635
        %v637 = vmul.f32 %v636, 0.6931472
        %v638 = vmul.f32 -0.5, %v579
        %v639 = vadd.f32 %v638, 1.0
        %v640 = vmul.f32 %v639, %v579
        %v641 = vand.u32 2147483647, %v579
        %vm642 = vcmp.lt.f32.partialorder %v641, 0.0004427343
        %v643 = vsel %vm642, %v640, %v637
        %v644 = vadd.f32 %v580, 1.0
        %v645 = vlog2.pop %v644
        %v646 = vmul.f32 %v645, 0.6931472
        %v647 = vmul.f32 -0.5, %v580
        %v648 = vadd.f32 %v647, 1.0
        %v649 = vmul.f32 %v648, %v580
        %v650 = vand.u32 2147483647, %v580
        %vm651 = vcmp.lt.f32.partialorder %v650, 0.0004427343
        %v652 = vsel %vm651, %v649, %v646
        %v653 = vadd.f32 %v581, 1.0
        %v654 = vlog2.pop %v653
        %v655 = vmul.f32 %v654, 0.6931472
        %v656 = vmul.f32 -0.5, %v581
        %v657 = vadd.f32 %v656, 1.0
        %v658 = vmul.f32 %v657, %v581
        %v659 = vand.u32 2147483647, %v581
        %vm660 = vcmp.lt.f32.partialorder %v659, 0.0004427343
        %v661 = vsel %vm660, %v658, %v655
        %v662 = vadd.f32 %v582, 1.0
        %v663 = vlog2.pop %v662
        %v664 = vmul.f32 %v663, 0.6931472
        %v665 = vmul.f32 -0.5, %v582
        %v666 = vadd.f32 %v665, 1.0
        %v667 = vmul.f32 %v666, %v582
        %v668 = vand.u32 2147483647, %v582
        %vm669 = vcmp.lt.f32.partialorder %v668, 0.0004427343
        %v670 = vsel %vm669, %v667, %v664
        %v671 = vadd.f32 %v583, 1.0
        %v672 = vlog2.pop %v671
        %v673 = vmul.f32 %v672, 0.6931472
        %v674 = vmul.f32 -0.5, %v583
        %v675 = vadd.f32 %v674, 1.0
        %v676 = vmul.f32 %v675, %v583
        %v677 = vand.u32 2147483647, %v583
        %vm678 = vcmp.lt.f32.partialorder %v677, 0.0004427343
        %v679 = vsel %vm678, %v676, %v673
        %v680 = vadd.f32 %v584, 1.0
        %v681 = vlog2.pop %v680
        %v682 = vmul.f32 %v681, 0.6931472
        %v683 = vmul.f32 -0.5, %v584
        %v684 = vadd.f32 %v683, 1.0
        %v685 = vmul.f32 %v684, %v584
        %v686 = vand.u32 2147483647, %v584
        %vm687 = vcmp.lt.f32.partialorder %v686, 0.0004427343
        %v688 = vsel %vm687, %v685, %v682
        %v689 = vadd.f32 %v585, 1.0
        %v690 = vlog2.pop %v689
        %v691 = vmul.f32 %v690, 0.6931472
        %v692 = vmul.f32 -0.5, %v585
        %v693 = vadd.f32 %v692, 1.0
        %v694 = vmul.f32 %v693, %v585
        %v695 = vand.u32 2147483647, %v585
        %vm696 = vcmp.lt.f32.partialorder %v695, 0.0004427343
        %v697 = vsel %vm696, %v694, %v691
        %v698 = vadd.f32 %v586, 1.0
        %v699 = vlog2.pop %v698
        %v700 = vmul.f32 %v699, 0.6931472
        %v701 = vmul.f32 -0.5, %v586
        %v702 = vadd.f32 %v701, 1.0
        %v703 = vmul.f32 %v702, %v586
        %v704 = vand.u32 2147483647, %v586
        %vm705 = vcmp.lt.f32.partialorder %v704, 0.0004427343
        %v706 = vsel %vm705, %v703, %v700
        %v707 = vadd.f32 %v587, 1.0
        %v708 = vlog2.pop %v707
        %v709 = vmul.f32 %v708, 0.6931472
        %v710 = vmul.f32 -0.5, %v587
        %v711 = vadd.f32 %v710, 1.0
        %v712 = vmul.f32 %v711, %v587
        %v713 = vand.u32 2147483647, %v587
        %vm714 = vcmp.lt.f32.partialorder %v713, 0.0004427343
        %v715 = vsel %vm714, %v712, %v709
        %v716 = vadd.f32 %v588, 1.0
        %v717 = vlog2.pop %v716
        %v718 = vmul.f32 %v717, 0.6931472
        %v719 = vmul.f32 -0.5, %v588
        %v720 = vadd.f32 %v719, 1.0
        %v721 = vmul.f32 %v720, %v588
        %v722 = vand.u32 2147483647, %v588
        %vm723 = vcmp.lt.f32.partialorder %v722, 0.0004427343
        %v724 = vsel %vm723, %v721, %v718
        %v725 = vadd.f32 %v589, 1.0
        %v726 = vlog2.pop %v725
        %v727 = vmul.f32 %v726, 0.6931472
        %v728 = vmul.f32 -0.5, %v589
        %v729 = vadd.f32 %v728, 1.0
        %v730 = vmul.f32 %v729, %v589
        %v731 = vand.u32 2147483647, %v589
        %vm732 = vcmp.lt.f32.partialorder %v731, 0.0004427343
        %v733 = vsel %vm732, %v730, %v727
        %v734 = vld [vmem:[%s347] sm:$0xff]
        %v735 = vlaneseq
        %v736 = vshrl.u32 %v735, 7
        %v737 = vsub.s32 0, %v736
        %v738 = vrot.slane %v734, %v737
        %740 = vbcast.lane.b32.xlu0 %v738, 256
        %v741 = vpop.permute.xlu0 %740
        %v742 = vlaneseq
        %v743 = vshrl.u32 %v742, 7
        %v744 = vsub.s32 1, %v743
        %v745 = vrot.slane %v734, %v744
        %747 = vbcast.lane.b32.xlu0 %v745, 256
        %v748 = vpop.permute.xlu0 %747
        %v749 = vlaneseq
        %v750 = vshrl.u32 %v749, 7
        %v751 = vsub.s32 2, %v750
        %v752 = vrot.slane %v734, %v751
        %754 = vbcast.lane.b32.xlu0 %v752, 256
        %v755 = vpop.permute.xlu0 %754
        %v756 = vlaneseq
        %v757 = vshrl.u32 %v756, 7
        %v758 = vsub.s32 3, %v757
        %v759 = vrot.slane %v734, %v758
        %761 = vbcast.lane.b32.xlu0 %v759, 256
        %v762 = vpop.permute.xlu0 %761
        %v763 = vlaneseq
        %v764 = vshrl.u32 %v763, 7
        %v765 = vsub.s32 4, %v764
        %v766 = vrot.slane %v734, %v765
        %768 = vbcast.lane.b32.xlu0 %v766, 256
        %v769 = vpop.permute.xlu0 %768
        %v770 = vlaneseq
        %v771 = vshrl.u32 %v770, 7
        %v772 = vsub.s32 5, %v771
        %v773 = vrot.slane %v734, %v772
        %775 = vbcast.lane.b32.xlu0 %v773, 256
        %v776 = vpop.permute.xlu0 %775
        %v777 = vlaneseq
        %v778 = vshrl.u32 %v777, 7
        %v779 = vsub.s32 6, %v778
        %v780 = vrot.slane %v734, %v779
        %782 = vbcast.lane.b32.xlu0 %v780, 256
        %v783 = vpop.permute.xlu0 %782
        %v784 = vlaneseq
        %v785 = vshrl.u32 %v784, 7
        %v786 = vsub.s32 7, %v785
        %v787 = vrot.slane %v734, %v786
        %789 = vbcast.lane.b32.xlu0 %v787, 256
        %v790 = vpop.permute.xlu0 %789
        %v791 = vmul.f32 %v598, %v741
        %v792 = vmul.f32 %v607, %v741
        %v793 = vmul.f32 %v616, %v748
        %v794 = vmul.f32 %v625, %v748
        %v795 = vmul.f32 %v634, %v755
        %v796 = vmul.f32 %v643, %v755
        %v797 = vmul.f32 %v652, %v762
        %v798 = vmul.f32 %v661, %v762
        %v799 = vmul.f32 %v670, %v769
        %v800 = vmul.f32 %v679, %v769
        %v801 = vmul.f32 %v688, %v776
        %v802 = vmul.f32 %v697, %v776
        %v803 = vmul.f32 %v706, %v783
        %v804 = vmul.f32 %v715, %v783
        %v805 = vmul.f32 %v724, %v790
        %v806 = vmul.f32 %v733, %v790
        %v807 = vrot.slane %v791, 4
        %v808 = vmax.f32 %v791, %v807
        %v809 = vrot.slane %v808, 2
        %v810 = vmax.f32 %v808, %v809
        %v811 = vrot.slane %v810, 1
        %v812 = vmax.f32 %v810, %v811
        %v813 = vrot.slane %v792, 4
        %v814 = vmax.f32 %v792, %v813
        %v815 = vrot.slane %v814, 2
        %v816 = vmax.f32 %v814, %v815
        %v817 = vrot.slane %v816, 1
        %v818 = vmax.f32 %v816, %v817
        %v819 = vrot.slane %v793, 4
        %v820 = vmax.f32 %v793, %v819
        %v821 = vrot.slane %v820, 2
        %v822 = vmax.f32 %v820, %v821
        %v823 = vrot.slane %v822, 1
        %v824 = vmax.f32 %v822, %v823
        %v825 = vrot.slane %v794, 4
        %v826 = vmax.f32 %v794, %v825
        %v827 = vrot.slane %v826, 2
        %v828 = vmax.f32 %v826, %v827
        %v829 = vrot.slane %v828, 1
        %v830 = vmax.f32 %v828, %v829
        %v831 = vrot.slane %v795, 4
        %v832 = vmax.f32 %v795, %v831
        %v833 = vrot.slane %v832, 2
        %v834 = vmax.f32 %v832, %v833
        %v835 = vrot.slane %v834, 1
        %v836 = vmax.f32 %v834, %v835
        %v837 = vrot.slane %v796, 4
        %v838 = vmax.f32 %v796, %v837
        %v839 = vrot.slane %v838, 2
        %v840 = vmax.f32 %v838, %v839
        %v841 = vrot.slane %v840, 1
        %v842 = vmax.f32 %v840, %v841
        %v843 = vrot.slane %v797, 4
        %v844 = vmax.f32 %v797, %v843
        %v845 = vrot.slane %v844, 2
        %v846 = vmax.f32 %v844, %v845
        %v847 = vrot.slane %v846, 1
        %v848 = vmax.f32 %v846, %v847
        %v849 = vrot.slane %v798, 4
        %v850 = vmax.f32 %v798, %v849
        %v851 = vrot.slane %v850, 2
        %v852 = vmax.f32 %v850, %v851
        %v853 = vrot.slane %v852, 1
        %v854 = vmax.f32 %v852, %v853
        %v855 = vrot.slane %v799, 4
        %v856 = vmax.f32 %v799, %v855
        %v857 = vrot.slane %v856, 2
        %v858 = vmax.f32 %v856, %v857
        %v859 = vrot.slane %v858, 1
        %v860 = vmax.f32 %v858, %v859
        %v861 = vrot.slane %v800, 4
        %v862 = vmax.f32 %v800, %v861
        %v863 = vrot.slane %v862, 2
        %v864 = vmax.f32 %v862, %v863
        %v865 = vrot.slane %v864, 1
        %v866 = vmax.f32 %v864, %v865
        %v867 = vrot.slane %v801, 4
        %v868 = vmax.f32 %v801, %v867
        %v869 = vrot.slane %v868, 2
        %v870 = vmax.f32 %v868, %v869
        %v871 = vrot.slane %v870, 1
        %v872 = vmax.f32 %v870, %v871
        %v873 = vrot.slane %v802, 4
        %v874 = vmax.f32 %v802, %v873
        %v875 = vrot.slane %v874, 2
        %v876 = vmax.f32 %v874, %v875
        %v877 = vrot.slane %v876, 1
        %v878 = vmax.f32 %v876, %v877
        %v879 = vrot.slane %v803, 4
        %v880 = vmax.f32 %v803, %v879
        %v881 = vrot.slane %v880, 2
        %v882 = vmax.f32 %v880, %v881
        %v883 = vrot.slane %v882, 1
        %v884 = vmax.f32 %v882, %v883
        %v885 = vrot.slane %v804, 4
        %v886 = vmax.f32 %v804, %v885
        %v887 = vrot.slane %v886, 2
        %v888 = vmax.f32 %v886, %v887
        %v889 = vrot.slane %v888, 1
        %v890 = vmax.f32 %v888, %v889
        %v891 = vrot.slane %v805, 4
        %v892 = vmax.f32 %v805, %v891
        %v893 = vrot.slane %v892, 2
        %v894 = vmax.f32 %v892, %v893
        %v895 = vrot.slane %v894, 1
        %v896 = vmax.f32 %v894, %v895
        %v897 = vrot.slane %v806, 4
        %v898 = vmax.f32 %v806, %v897
        %v899 = vrot.slane %v898, 2
        %v900 = vmax.f32 %v898, %v899
        %v901 = vrot.slane %v900, 1
        %v902 = vmax.f32 %v900, %v901
        %vm919 = vcmask 1041409
        %v920 = vsel %vm919, %v824, %v812
        %vm921 = vcmask 1042434
        %v922 = vsel %vm921, %v836, %v920
        %vm923 = vcmask 1043459
        %v924 = vsel %vm923, %v848, %v922
        %vm925 = vcmask 1044484
        %v926 = vsel %vm925, %v860, %v924
        %vm927 = vcmask 1045509
        %v928 = vsel %vm927, %v872, %v926
        %vm929 = vcmask 1046534
        %v930 = vsel %vm929, %v884, %v928
        %vm931 = vcmask 1047559
        %v932 = vsel %vm931, %v896, %v930
        %v933 = vsel %vm919, %v830, %v818
        %v934 = vsel %vm921, %v842, %v933
        %v935 = vsel %vm923, %v854, %v934
        %v936 = vsel %vm925, %v866, %v935
        %v937 = vsel %vm927, %v878, %v936
        %v938 = vsel %vm929, %v890, %v937
        %v939 = vsel %vm931, %v902, %v938
        %942 = vst [vmem:[%s336] sm:$0xff] %v932
        %943 = vst [vmem:[%s336 + $0x8] sm:$0xff] %v939
        %s944 = sand.u32 %s155, 1
        %s945 = scalar_lea.sflag [#allocation4], %s944
        %s946 = sand.u32 %s155, 1
        %s947 = smul.addr %s946, 64
        %s948 = scalar_lea.vmem [#allocation7], %s947
        %s949 = sand.u32 %s183, 1
        %s950 = scalar_lea.sflag [#allocation9], %s949
        %s951 = sand.u32 %s183, 1
        %s952 = smul.addr %s951, 16
        %s953 = scalar_lea.vmem [#allocation8], %s952
        // Predicated region
        $region45: #{tpu_custom_call.1} parent=35 // pred_check
          %p954 = pneg %p165
        $region46: #{tpu_custom_call.1} parent=35 // pred_check_branch
          %956 = sbr.rel (%p954) target = $region48
        $region47: #{tpu_custom_call.1} parent=35 // pred_region
          %s957 = smul.u32 8, %s33
          %s958 = smul.u32 2, %s34
          %s960 = ssub.s32 1024, 1024
          %961 = vsyncadd %s945, %s960
          %s962 = smul.addr %s957, 4
          %s963 = sadd.s32 %s958, %s962
          %s964 = smul.addr %s963, 64
          %s965 = scalar_lea.hbm %s4, %s964
          %s966 = sshll.u32 %s948, 4
          %s967 = int_to_ptr.vmem [resolvable:$true] %s966
          %972 = dma.vmem_to_hbm [thread:$0]  %s967, 1024, %s965, %s945, 128, 256, 8
        $region48: #{tpu_custom_call.1} parent=35 // pred_fallthru
          _
        // Predicated region
        $region49: #{tpu_custom_call.1} parent=35 // pred_check
          %p973 = pneg %p193
        $region50: #{tpu_custom_call.1} parent=35 // pred_check_branch
          %975 = sbr.rel (%p973) target = $region52
        $region51: #{tpu_custom_call.1} parent=35 // pred_region
          %s976 = smul.u32 2, %s34
          %s978 = ssub.s32 256, 256
          %979 = vsyncadd %s950, %s978
          %s980 = smul.addr %s33, 4
          %s981 = sadd.s32 %s976, %s980
          %s982 = smul.addr %s981, 128
          %s983 = scalar_lea.hbm %s5, %s982
          %s985 = sshll.u32 %s953, 4
          %s986 = int_to_ptr.vmem [resolvable:$true] %s985
          %988 = dma.vmem_to_hbm [thread:$0]  %s986, 256, %s983, %s950
        $region52: #{tpu_custom_call.1} parent=35 // pred_fallthru
          _
      $region36: #{tpu_custom_call.1} parent=5 // pred_fallthru
        _
      %p989 = scmp.le.s32.totalorder 2, %s24
      // Predicated region
      $region53: #{tpu_custom_call.1} parent=5 // pred_check
        %p990 = pneg %p989
      $region54: #{tpu_custom_call.1} parent=5 // pred_check_branch
        %992 = sbr.rel (%p990) target = $region56
      $region55: #{tpu_custom_call.1} parent=5 // pred_region
        %s993 = ssub.s32 %s24, 2
        // Predicated region
        $region57: #{tpu_custom_call.1} parent=55 // pred_check
          %p994 = pneg %p171
        $region58: #{tpu_custom_call.1} parent=55 // pred_check_branch
          %996 = sbr.rel (%p994) target = $region60
        $region59: #{tpu_custom_call.1} parent=55 // pred_region
          %s997 = sand.u32 %s156, 1
          %s998 = scalar_lea.sflag [#allocation4], %s997
          %s999 = sand.u32 %s156, 1
          %s1000 = smul.addr %s999, 64
          %s1001 = scalar_lea.vmem [#allocation7], %s1000
          %1002 = dma.done %s998, 1024
        $region60: #{tpu_custom_call.1} parent=55 // pred_fallthru
          _
        // Predicated region
        $region61: #{tpu_custom_call.1} parent=55 // pred_check
          %p1003 = pneg %p199
        $region62: #{tpu_custom_call.1} parent=55 // pred_check_branch
          %1005 = sbr.rel (%p1003) target = $region64
        $region63: #{tpu_custom_call.1} parent=55 // pred_region
          %s1006 = sand.u32 %s184, 1
          %s1007 = scalar_lea.sflag [#allocation9], %s1006
          %s1008 = sand.u32 %s184, 1
          %s1009 = smul.addr %s1008, 16
          %s1010 = scalar_lea.vmem [#allocation8], %s1009
          %1011 = dma.done %s1007, 256
        $region64: #{tpu_custom_call.1} parent=55 // pred_fallthru
          _
      $region56: #{tpu_custom_call.1} parent=5 // pred_fallthru
        _
    $region6: #{tpu_custom_call.1} parent=1 // loop_footer
      %s28 = sadd.s32 1, %s24
    $region7: #{tpu_custom_call.1} parent=1 // loop_footer_branch
      %23 = sbr.rel target = $region3
    $region8: #{tpu_custom_call.1} parent=1 // loop_exit
      _
    %1012 = vsyncpa [#allocation3], 1
    %s1013 = scalar_lea.sflag [#allocation3], 1
    %1014 = vsyncpa %s1013, 1
    %1015 = vsyncpa [#allocation6], 1
    %s1016 = scalar_lea.sflag [#allocation6], 1
    %1017 = vsyncpa %s1016, 1
    %1018 = vsyncpa [#allocation4], 1
    %s1019 = scalar_lea.sflag [#allocation4], 1
    %1020 = vsyncpa %s1019, 1
    %1021 = vsyncpa [#allocation9], 1
    %s1022 = scalar_lea.sflag [#allocation9], 1
    %1023 = vsyncpa %s1022, 1

</llo_original>
